<compile_context>
chip_gen: v7x
topology: tpu7x:2x2x1
jax: 0.10.0
libtpu: 0.0.40
codegen_flags: <defaults>
</compile_context>

<pallas_src>
import functools

import numpy as np

import jax
import jax.numpy as jnp
from jax.experimental import pallas as pl
from jax.experimental.pallas import tpu as pltpu


def _round_up(x, m):
    return ((x + m - 1) // m) * m


# ----------------------------------------------------------------------------
# Kernel: one row tile of  out = epilogue(x @ w + bias)
#   x_ref: (tm, K)   w_ref: (K, Nout)  (resident)   b_ref: (1, Nout)
# Single dot per row tile -> accumulation stays in vregs / compiler-managed,
# only the fused epilogue stores.
# ----------------------------------------------------------------------------
def _mm_kernel(x_ref, w_ref, b_ref, o_ref, *, epilogue, valid_cols):
    z = jnp.dot(x_ref[...], w_ref[...], preferred_element_type=jnp.float32)
    z = z + b_ref[...]
    if epilogue == "relu":
        z = jnp.maximum(z, 0.0)
    elif epilogue == "log_softmax":
        # mask padded class lanes so they don't pollute the normalizer
        cols = jax.lax.broadcasted_iota(jnp.int32, z.shape, 1)
        z = jnp.where(cols < valid_cols, z, -jnp.inf)
        m = jnp.max(z, axis=1, keepdims=True)
        zs = z - m
        lse = jnp.log(jnp.sum(jnp.exp(zs), axis=1, keepdims=True))
        z = zs - lse
    o_ref[...] = z.astype(o_ref.dtype)


def _vmem_estimate(tm, kdim, nout, in_bytes=2, out_bytes=2):
    """Working-set bytes: double-buffered row block + resident weights + output
    blocks + f32 accumulation headroom."""
    return (2 * tm * kdim * in_bytes        # x row block (double-buffered)
            + 2 * kdim * nout * in_bytes    # weight block (constant index)
            + 2 * nout * 4                  # bias
            + 2 * tm * nout * out_bytes     # output block (double-buffered)
            + tm * nout * 4)                # f32 accumulation


def tiled_matmul(x, w, bias, *, epilogue, out_dtype, tm, valid_cols=None):
    m, kdim = x.shape
    kw, nout = w.shape
    assert kw == kdim and m % tm == 0 and nout % 128 == 0
    if valid_cols is None:
        valid_cols = nout

    kernel = functools.partial(_mm_kernel, epilogue=epilogue,
                               valid_cols=valid_cols)

    out_bytes = np.dtype(out_dtype).itemsize
    est = _vmem_estimate(tm, kdim, nout,
                         in_bytes=np.dtype(x.dtype).itemsize,
                         out_bytes=out_bytes)
    # explicit limit (v5e scoped default is 16 MiB, v7x physical is 64 MiB)
    vmem_limit = int(min(max(est * 5 // 4 + (2 << 20), 16 << 20), 48 << 20))

    return pl.pallas_call(
        kernel,
        out_shape=jax.ShapeDtypeStruct((m, nout), out_dtype),
        grid=(m // tm,),
        in_specs=[
            pl.BlockSpec((tm, kdim), lambda i: (i, 0)),
            pl.BlockSpec((kdim, nout), lambda i: (0, 0)),   # resident in VMEM
            pl.BlockSpec((1, nout), lambda i: (0, 0)),
        ],
        out_specs=pl.BlockSpec((tm, nout), lambda i: (i, 0)),
        compiler_params=pltpu.CompilerParams(
            dimension_semantics=("parallel",),
            vmem_limit_bytes=vmem_limit),
    )(x, w, bias)


# ----------------------------------------------------------------------------
# Plain-JAX glue: dense D^-1/2 (A + I) D^-1/2, degree taken from the *source*
# index (row = edge_index[0]) and aggregation into the target (col), exactly as
# the reference module's forward()/propagate() does. Built directly at the
# padded shape so no extra N^2 temporaries are created.
# ----------------------------------------------------------------------------
def build_norm_adjacency(edge_index, num_nodes, padded_nodes=None,
                         dtype=jnp.float32):
    if padded_nodes is None:
        padded_nodes = num_nodes
    loop = jnp.arange(num_nodes, dtype=edge_index.dtype)
    row = jnp.concatenate([edge_index[0], loop])   # source (j)
    col = jnp.concatenate([edge_index[1], loop])   # target (i)
    deg = jnp.zeros((num_nodes,), jnp.float32).at[row].add(1.0)
    deg_inv_sqrt = jnp.where(deg > 0.0, deg ** -0.5, 0.0)
    norm = deg_inv_sqrt[row] * deg_inv_sqrt[col]
    # out[col[e]] += norm[e] * x[row[e]]  ==>  A[col, row] += norm
    a = (jnp.zeros((padded_nodes, padded_nodes), jnp.float32)
         .at[col, row].add(norm))
    return a.astype(dtype)


def gcn_forward(x, edge_index, w1, b1, w2, b2, *, tm=512,
                vmem_budget=40 << 20):
    n, f_in = x.shape
    hidden = w1.shape[0]
    n_cls = w2.shape[0]

    # lane padding for feature dims
    f_in_p = _round_up(f_in, 128)
    hp = _round_up(hidden, 128)
    cp = _round_up(n_cls, 128)

    # Row tile: don't over-pad tiny graphs; shrink until the aggregation
    # working set (double-buffered full-K A row block + resident p) fits the
    # v7x-safe VMEM budget.
    tm_cands = [t for t in (512, 256, 128) if t <= _round_up(n, 128)] or [128]
    tm = tm_cands[-1]
    for t in tm_cands:
        if _vmem_estimate(t, _round_up(n, t), max(hp, cp)) <= vmem_budget:
            tm = t
            break
    np_ = _round_up(n, tm)

    # normalized adjacency, built at the padded shape, cast to bf16 once
    a = build_norm_adjacency(edge_index, n, padded_nodes=np_,
                             dtype=jnp.bfloat16)

    # all matmul operands in bf16 (f32 accumulation inside the kernels)
    xp = jnp.pad(x, ((0, np_ - n), (0, f_in_p - f_in))).astype(jnp.bfloat16)
    w1t = jnp.pad(w1.T, ((0, f_in_p - f_in), (0, hp - hidden))).astype(jnp.bfloat16)
    b1p = jnp.pad(b1.astype(jnp.float32), (0, hp - hidden)).reshape(1, hp)
    w2t = jnp.pad(w2.T, ((0, hp - hidden), (0, cp - n_cls))).astype(jnp.bfloat16)
    b2p = jnp.pad(b2.astype(jnp.float32), (0, cp - n_cls)).reshape(1, cp)

    zero_h = jnp.zeros((1, hp), jnp.float32)
    zero_c = jnp.zeros((1, cp), jnp.float32)

    # ---- layer 1: projection, then aggregation + bias + ReLU ----
    p1 = tiled_matmul(xp, w1t, zero_h, epilogue="none",
                      out_dtype=jnp.bfloat16, tm=tm)
    h = tiled_matmul(a, p1, b1p, epilogue="relu",
                     out_dtype=jnp.bfloat16, tm=tm)
    # TODO(synk): F.dropout(training=True) not implemented; eval-mode identity.

    # ---- layer 2: projection, then aggregation + bias + log_softmax ----
    p2 = tiled_matmul(h, w2t, zero_c, epilogue="none",
                      out_dtype=jnp.bfloat16, tm=tm)
    out = tiled_matmul(a, p2, b2p, epilogue="log_softmax", valid_cols=n_cls,
                       out_dtype=jnp.float32, tm=tm)

    # strip node/class padding
    return out[:n, :n_cls]


if __name__ == "__main__":
    # Small synthetic "Cora-like" graph.
    N, F_IN, HIDDEN, C = 16, 8, 16, 4
    NUM_EDGES = 40

    key = jax.random.PRNGKey(0)
    kx, ke1, ke2, kw1, kw2 = jax.random.split(key, 5)

    x = jax.random.normal(kx, (N, F_IN), dtype=jnp.float32)
    src = jax.random.randint(ke1, (NUM_EDGES,), 0, N, dtype=jnp.int32)
    dst = jax.random.randint(ke2, (NUM_EDGES,), 0, N, dtype=jnp.int32)
    edge_index = jnp.stack([src, dst], axis=0)   # [2, E]

    # Linear weights are [out, in]; biases zero like reset_parameters().
    w1 = jax.random.uniform(kw1, (HIDDEN, F_IN), jnp.float32, -0.3, 0.3)
    b1 = jnp.zeros((HIDDEN,), jnp.float32)
    w2 = jax.random.uniform(kw2, (C, HIDDEN), jnp.float32, -0.3, 0.3)
    b2 = jnp.zeros((C,), jnp.float32)

    out = gcn_forward(x, edge_index, w1, b1, w2, b2)
    jax.block_until_ready(out)

    assert out.shape == (N, C)
    # rows of log_softmax must exponentiate-sum to ~1
    assert jnp.allclose(jnp.sum(jnp.exp(out), axis=1), 1.0, atol=1e-4)

    # pure-JAX f32 reference (loose tol: kernel uses bf16 operands)
    a_ref = build_norm_adjacency(edge_index, N)
    h_ref = jnp.maximum(a_ref @ (x @ w1.T) + b1, 0.0)
    z_ref = a_ref @ (h_ref @ w2.T) + b2
    ref = jax.nn.log_softmax(z_ref, axis=1)
    assert jnp.allclose(out, ref, atol=7.5e-2), float(jnp.max(jnp.abs(out - ref)))

    print("KERNEL_OK")
</pallas_src>

<mosaic_0001>
module attributes {stable_mosaic.version = 11 : i64} {
  func.func @_mm_kernel(%arg0: i32, %arg1: memref<128x128xbf16, #tpu.memory_space<vmem>>, %arg2: memref<128x128xbf16, #tpu.memory_space<vmem>>, %arg3: memref<1x128xf32, #tpu.memory_space<vmem>>, %arg4: memref<128x128xbf16, #tpu.memory_space<vmem>>) attributes {dimension_semantics = [#tpu.dimension_semantics<parallel>], iteration_bounds = array<i64: 1>, scalar_prefetch = 0 : i64, scratch_operands = 0 : i64, tpu.core_type = #tpu.core_type<tc>, window_params = [{transform_indices = @transform_0, window_bounds = array<i64: 128, 128>}, {pipeline_mode = #tpu.pipeline_mode<synchronous>, transform_indices = @transform_1, window_bounds = array<i64: 128, 128>}, {pipeline_mode = #tpu.pipeline_mode<synchronous>, transform_indices = @transform_2, window_bounds = array<i64: 1, 128>}, {transform_indices = @transform_3, window_bounds = array<i64: 128, 128>}]} {
    %c0 = arith.constant 0 : index
    %c0_0 = arith.constant 0 : index
    %0 = vector.load %arg1[%c0, %c0_0] : memref<128x128xbf16, #tpu.memory_space<vmem>>, vector<128x128xbf16>
    %c0_1 = arith.constant 0 : index
    %c0_2 = arith.constant 0 : index
    %1 = vector.load %arg2[%c0_1, %c0_2] : memref<128x128xbf16, #tpu.memory_space<vmem>>, vector<128x128xbf16>
    %cst = arith.constant dense<0.000000e+00> : vector<128x128xf32>
    %2 = tpu.matmul %0, %1, %cst {dimension_numbers = #tpu.dot_dimension_numbers<[1], [0], [0], [1], [0, 0, 1, 1], [], []>} : vector<128x128xbf16>, vector<128x128xbf16>, vector<128x128xf32> -> vector<128x128xf32>
    %c0_3 = arith.constant 0 : index
    %c0_4 = arith.constant 0 : index
    %3 = vector.load %arg3[%c0_3, %c0_4] : memref<1x128xf32, #tpu.memory_space<vmem>>, vector<1x128xf32>
    %4 = vector.broadcast %3 : vector<1x128xf32> to vector<128x128xf32>
    %5 = arith.addf %2, %4 : vector<128x128xf32>
    %6 = arith.truncf %5 : vector<128x128xf32> to vector<128x128xbf16>
    %c0_5 = arith.constant 0 : index
    %c0_6 = arith.constant 0 : index
    %7 = vector.load %arg4[%c0_5, %c0_6] : memref<128x128xbf16, #tpu.memory_space<vmem>>, vector<128x128xbf16>
    tpu.vector_store %arg4[%c0_5, %c0_6], %6 {strides = array<i32>} : memref<128x128xbf16, #tpu.memory_space<vmem>>, vector<128x128xbf16>,
    return
  }
  func.func @transform_0(%arg0: i32) -> (i32, i32) {
    %c0_i32 = arith.constant 0 : i32
    %c0_i32_0 = arith.constant 0 : i32
    return %arg0, %c0_i32 : i32, i32
  }
  func.func @transform_1(%arg0: i32) -> (i32, i32) {
    %c0_i32 = arith.constant 0 : i32
    %c0_i32_0 = arith.constant 0 : i32
    %c0_i32_1 = arith.constant 0 : i32
    return %c0_i32, %c0_i32_0 : i32, i32
  }
  func.func @transform_2(%arg0: i32) -> (i32, i32) {
    %c0_i32 = arith.constant 0 : i32
    %c0_i32_0 = arith.constant 0 : i32
    %c0_i32_1 = arith.constant 0 : i32
    return %c0_i32, %c0_i32_0 : i32, i32
  }
  func.func @transform_3(%arg0: i32) -> (i32, i32) {
    %c0_i32 = arith.constant 0 : i32
    %c0_i32_0 = arith.constant 0 : i32
    return %arg0, %c0_i32 : i32, i32
  }
}

</mosaic_0001>

<llo_original>
// kernel: tpu_custom_call.1
$region0: #{tpu_custom_call.1}
  #allocation0 [shape = 'u32[]', space=smem, size = 0x4, offset = 0x4, fixed_abs, tag = 'smem constant byte address 0x4 - core index']
  #allocation1 [shape = 'u32[144,128]{1,0:T(1,128)}', space=vmem, size = 0x12000, scoped, tag = 'internal scratch']
  %s0 = inlined_call_operand.hbm [shape: bf16[128,128], index: 0, kind: input, shape index: {}]
  %s1 = inlined_call_operand.hbm [shape: bf16[128,128], index: 1, kind: input, shape index: {}]
  %s2 = inlined_call_operand.vmem [shape: f32[1,128], index: 2, kind: input, shape index: {}]
  %s3 = inlined_call_operand.hbm [shape: bf16[128,128], index: 3, kind: output, shape index: {}]
  %s4 = sld [smem:[#allocation0]]
  $region30: #{tpu_custom_call.1} parent=0
    _
  %s6 = ssub.s32 1, %s4
  %s7 = scalar_select 0, %s6, %s4
  $region1: #{tpu_custom_call.1} parent=0
    #allocation2 [shape = 'u8[32768]{0}', space=vmem, size = 0x8000, scoped, tag = 'input window, operand 0, single buffered']
    #allocation3 [shape = 's32[1]{0}', space=sflag, size = 0x4, scoped, tag = 'scoped memory for tpu_custom_call.1']
    #allocation4 [shape = 's32[1]{0}', space=sflag, size = 0x4, scoped, tag = 'scoped memory for tpu_custom_call.1']
    #allocation5 [shape = 'u8[32768]{0}', space=vmem, size = 0x8000, scoped, tag = 'input window, operand 1, single buffered']
    #allocation6 [shape = 's32[1]{0}', space=sflag, size = 0x4, scoped, tag = 'scoped memory for tpu_custom_call.1']
    #allocation7 [shape = 'u8[32768]{0}', space=vmem, size = 0x8000, scoped, tag = 'output window, operand 0, single buffered']
    %8 = vsyncpa [#allocation3], 0
    %9 = vsyncpa [#allocation6], 0
    %10 = vsyncpa [#allocation4], 0
    // Predicated region
    $region2: #{tpu_custom_call.1} parent=1 // pred_check
      _
    $region3: #{tpu_custom_call.1} parent=1 // pred_check_branch
      %12 = sbr.rel (0) target = $region5
    $region4: #{tpu_custom_call.1} parent=1 // pred_region
      %s14 = ssub.s32 1024, 1024
      %15 = vsyncadd [#allocation3], %s14
      %s16 = sshll.u32 [#allocation2], 4
      %s17 = int_to_ptr.vmem [resolvable:$true] %s16
      %22 = dma.hbm_to_vmem [thread:$0]  %s0, 1024, %s17, [#allocation3], 64, 64, 4
    $region5: #{tpu_custom_call.1} parent=1 // pred_fallthru
      _
    // Predicated region
    $region6: #{tpu_custom_call.1} parent=1 // pred_check
      _
    $region7: #{tpu_custom_call.1} parent=1 // pred_check_branch
      %24 = sbr.rel (0) target = $region9
    $region8: #{tpu_custom_call.1} parent=1 // pred_region
      %s26 = ssub.s32 1024, 1024
      %27 = vsyncadd [#allocation6], %s26
      %s28 = sshll.u32 [#allocation5], 4
      %s29 = int_to_ptr.vmem [resolvable:$true] %s28
      %34 = dma.hbm_to_vmem [thread:$0]  %s1, 1024, %s29, [#allocation6], 64, 64, 4
    $region9: #{tpu_custom_call.1} parent=1 // pred_fallthru
      _
    // Predicated region
    $region10: #{tpu_custom_call.1} parent=1 // pred_check
      _
    $region11: #{tpu_custom_call.1} parent=1 // pred_check_branch
      %36 = sbr.rel (0) target = $region13
    $region12: #{tpu_custom_call.1} parent=1 // pred_region
      _
    $region13: #{tpu_custom_call.1} parent=1 // pred_fallthru
      _
    // Predicated region
    $region14: #{tpu_custom_call.1} parent=1 // pred_check
      _
    $region15: #{tpu_custom_call.1} parent=1 // pred_check_branch
      %38 = sbr.rel (0) target = $region17
    $region16: #{tpu_custom_call.1} parent=1 // pred_region
      %39 = dma.done [#allocation3], 1024
    $region17: #{tpu_custom_call.1} parent=1 // pred_fallthru
      _
    // Predicated region
    $region18: #{tpu_custom_call.1} parent=1 // pred_check
      _
    $region19: #{tpu_custom_call.1} parent=1 // pred_check_branch
      %41 = sbr.rel (0) target = $region21
    $region20: #{tpu_custom_call.1} parent=1 // pred_region
      %42 = dma.done [#allocation6], 1024
    $region21: #{tpu_custom_call.1} parent=1 // pred_fallthru
      _
    %v44 = vld [vmem:[#allocation2] sm:$0xf]
    %v45 = vld [vmem:[#allocation2 + $0x4] sm:$0xf]
    %v46 = vld [vmem:[#allocation2 + $0x8] sm:$0xf]
    %v47 = vld [vmem:[#allocation2 + $0xc] sm:$0xf]
    %v48 = vld [vmem:[#allocation2 + $0x10] sm:$0xf]
    %v49 = vld [vmem:[#allocation2 + $0x14] sm:$0xf]
    %v50 = vld [vmem:[#allocation2 + $0x18] sm:$0xf]
    %v51 = vld [vmem:[#allocation2 + $0x1c] sm:$0xf]
    %v52 = vld [vmem:[#allocation2 + $0x20] sm:$0xf]
    %v53 = vld [vmem:[#allocation2 + $0x24] sm:$0xf]
    %v54 = vld [vmem:[#allocation2 + $0x28] sm:$0xf]
    %v55 = vld [vmem:[#allocation2 + $0x2c] sm:$0xf]
    %v56 = vld [vmem:[#allocation2 + $0x30] sm:$0xf]
    %v57 = vld [vmem:[#allocation2 + $0x34] sm:$0xf]
    %v58 = vld [vmem:[#allocation2 + $0x38] sm:$0xf]
    %v59 = vld [vmem:[#allocation2 + $0x3c] sm:$0xf]
    %v60 = vld [vmem:[#allocation5] sm:$0xf]
    %v61 = vld [vmem:[#allocation5 + $0x4] sm:$0xf]
    %v62 = vld [vmem:[#allocation5 + $0x8] sm:$0xf]
    %v63 = vld [vmem:[#allocation5 + $0xc] sm:$0xf]
    %v64 = vld [vmem:[#allocation5 + $0x10] sm:$0xf]
    %v65 = vld [vmem:[#allocation5 + $0x14] sm:$0xf]
    %v66 = vld [vmem:[#allocation5 + $0x18] sm:$0xf]
    %v67 = vld [vmem:[#allocation5 + $0x1c] sm:$0xf]
    %v68 = vld [vmem:[#allocation5 + $0x20] sm:$0xf]
    %v69 = vld [vmem:[#allocation5 + $0x24] sm:$0xf]
    %v70 = vld [vmem:[#allocation5 + $0x28] sm:$0xf]
    %v71 = vld [vmem:[#allocation5 + $0x2c] sm:$0xf]
    %v72 = vld [vmem:[#allocation5 + $0x30] sm:$0xf]
    %v73 = vld [vmem:[#allocation5 + $0x34] sm:$0xf]
    %v74 = vld [vmem:[#allocation5 + $0x38] sm:$0xf]
    %v75 = vld [vmem:[#allocation5 + $0x3c] sm:$0xf]
    %v76 = vld [vmem:[%s2] sm:$0x1]
    %v78 = vlaneseq
    %v79 = vshrl.u32 %v78, 7
    %v80 = vsub.s32 0, %v79
    %v81 = vrot.slane %v76, %v80
    %v99 = vunpack.c.l.b16 %v44
    %v100 = vunpack.c.l.b16 %v45
    %v101 = vunpack.c.l.b16 %v46
    %v102 = vunpack.c.l.b16 %v47
    %v103 = vunpack.c.l.b16 %v48
    %v104 = vunpack.c.l.b16 %v49
    %v105 = vunpack.c.l.b16 %v50
    %v106 = vunpack.c.l.b16 %v51
    %v107 = vunpack.c.l.b16 %v52
    %v108 = vunpack.c.l.b16 %v53
    %v109 = vunpack.c.l.b16 %v54
    %v110 = vunpack.c.l.b16 %v55
    %v111 = vunpack.c.l.b16 %v56
    %v112 = vunpack.c.l.b16 %v57
    %v113 = vunpack.c.l.b16 %v58
    %v114 = vunpack.c.l.b16 %v59
    %v115 = vpack.c.b16 %v100, %v99
    %v116 = vpack.c.b16 %v102, %v101
    %v117 = vpack.c.b16 %v104, %v103
    %v118 = vpack.c.b16 %v106, %v105
    %v119 = vpack.c.b16 %v108, %v107
    %v120 = vpack.c.b16 %v110, %v109
    %v121 = vpack.c.b16 %v112, %v111
    %v122 = vpack.c.b16 %v114, %v113
    %v147 = vunpack.c.l.b16 %v60
    %v148 = vunpack.c.l.b16 %v61
    %v149 = vunpack.c.l.b16 %v62
    %v150 = vunpack.c.l.b16 %v63
    %v151 = vunpack.c.l.b16 %v64
    %v152 = vunpack.c.l.b16 %v65
    %v153 = vunpack.c.l.b16 %v66
    %v154 = vunpack.c.l.b16 %v67
    %v155 = vunpack.c.l.b16 %v68
    %v156 = vunpack.c.l.b16 %v69
    %v157 = vunpack.c.l.b16 %v70
    %v158 = vunpack.c.l.b16 %v71
    %v159 = vunpack.c.l.b16 %v72
    %v160 = vunpack.c.l.b16 %v73
    %v161 = vunpack.c.l.b16 %v74
    %v162 = vunpack.c.l.b16 %v75
    %v163 = vpack.c.b16 %v148, %v147
    %v164 = vpack.c.b16 %v150, %v149
    %v165 = vpack.c.b16 %v152, %v151
    %v166 = vpack.c.b16 %v154, %v153
    %v167 = vpack.c.b16 %v156, %v155
    %v168 = vpack.c.b16 %v158, %v157
    %v169 = vpack.c.b16 %v160, %v159
    %v170 = vpack.c.b16 %v162, %v161
    %179 = vmatprep.subr.bf16.mxu0 0
    %180 = vmatpush1.bf16.msra.mxu0 %v163
    %181 = vmatprep.subr.bf16.mxu0 0
    %182 = vmatpush1.bf16.msra.mxu0 %v164
    %183 = vmatprep.subr.bf16.mxu0 0
    %184 = vmatpush1.bf16.msra.mxu0 %v165
    %185 = vmatprep.subr.bf16.mxu0 0
    %186 = vmatpush1.bf16.msra.mxu0 %v166
    %187 = vmatprep.subr.bf16.mxu0 0
    %188 = vmatpush1.bf16.msra.mxu0 %v167
    %189 = vmatprep.subr.bf16.mxu0 0
    %190 = vmatpush1.bf16.msra.mxu0 %v168
    %191 = vmatprep.subr.bf16.mxu0 0
    %192 = vmatpush1.bf16.msra.mxu0 %v169
    %193 = vmatprep.subr.bf16.mxu0 0
    %194 = vmatpush1.bf16.msra.mxu0 %v170
    %195 = vmatprep.subr.bf16.mxu0 0
    %196 = vmatpush1.bf16.msra.mxu0 0
    %197 = vmatprep.subr.bf16.mxu0 0
    %198 = vmatpush1.bf16.msra.mxu0 0
    %199 = vmatprep.subr.bf16.mxu0 0
    %200 = vmatpush1.bf16.msra.mxu0 0
    %201 = vmatprep.subr.bf16.mxu0 0
    %202 = vmatpush1.bf16.msra.mxu0 0
    %203 = vmatprep.subr.bf16.mxu0 0
    %204 = vmatpush1.bf16.msra.mxu0 0
    %205 = vmatprep.subr.bf16.mxu0 0
    %206 = vmatpush1.bf16.msra.mxu0 0
    %207 = vmatprep.subr.bf16.mxu0 0
    %208 = vmatpush1.bf16.msra.mxu0 0
    %209 = vmatprep.subr.bf16.mxu0 0
    %210 = vmatpush1.bf16.msra.mxu0 0
    %211 = vmatprep.mubr.bf16.mxu0 0
    %212 = vmatmul.mubr.bf16.gmra.mrb[0].mxu0 %v115
    %v213 = vpop.f32.mrb[0].mxu0
    %v214 = vadd.f32 %v81, %v213
    %v215 = vpop.f32.mrb[0].mxu0
    %v216 = vpop.f32.mrb[0].mxu0
    %v217 = vadd.f32 %v81, %v216
    %v218 = vpop.f32.mrb[0].mxu0
    %219 = vmatprep.mubr.bf16.mxu0 0
    %220 = vmatmul.mubr.bf16.gmra.mrb[0].mxu0 %v116
    %v221 = vpop.f32.mrb[0].mxu0
    %v222 = vadd.f32 %v81, %v221
    %v223 = vpop.f32.mrb[0].mxu0
    %v224 = vpop.f32.mrb[0].mxu0
    %v225 = vadd.f32 %v81, %v224
    %v226 = vpop.f32.mrb[0].mxu0
    %227 = vmatprep.mubr.bf16.mxu0 0
    %228 = vmatmul.mubr.bf16.gmra.mrb[0].mxu0 %v117
    %v229 = vpop.f32.mrb[0].mxu0
    %v230 = vadd.f32 %v81, %v229
    %v231 = vpop.f32.mrb[0].mxu0
    %v232 = vpop.f32.mrb[0].mxu0
    %v233 = vadd.f32 %v81, %v232
    %v234 = vpop.f32.mrb[0].mxu0
    %235 = vmatprep.mubr.bf16.mxu0 0
    %236 = vmatmul.mubr.bf16.gmra.mrb[0].mxu0 %v118
    %v237 = vpop.f32.mrb[0].mxu0
    %v238 = vadd.f32 %v81, %v237
    %v239 = vpop.f32.mrb[0].mxu0
    %v240 = vpop.f32.mrb[0].mxu0
    %v241 = vadd.f32 %v81, %v240
    %v242 = vpop.f32.mrb[0].mxu0
    %243 = vmatprep.mubr.bf16.mxu0 0
    %244 = vmatmul.mubr.bf16.gmra.mrb[0].mxu0 %v119
    %v245 = vpop.f32.mrb[0].mxu0
    %v246 = vadd.f32 %v81, %v245
    %v247 = vpop.f32.mrb[0].mxu0
    %v248 = vpop.f32.mrb[0].mxu0
    %v249 = vadd.f32 %v81, %v248
    %v250 = vpop.f32.mrb[0].mxu0
    %251 = vmatprep.mubr.bf16.mxu0 0
    %252 = vmatmul.mubr.bf16.gmra.mrb[0].mxu0 %v120
    %v253 = vpop.f32.mrb[0].mxu0
    %v254 = vadd.f32 %v81, %v253
    %v255 = vpop.f32.mrb[0].mxu0
    %v256 = vpop.f32.mrb[0].mxu0
    %v257 = vadd.f32 %v81, %v256
    %v258 = vpop.f32.mrb[0].mxu0
    %259 = vmatprep.mubr.bf16.mxu0 0
    %260 = vmatmul.mubr.bf16.gmra.mrb[0].mxu0 %v121
    %v261 = vpop.f32.mrb[0].mxu0
    %v262 = vadd.f32 %v81, %v261
    %v263 = vpop.f32.mrb[0].mxu0
    %v264 = vpop.f32.mrb[0].mxu0
    %v265 = vadd.f32 %v81, %v264
    %v266 = vpop.f32.mrb[0].mxu0
    %267 = vmatprep.mubr.bf16.mxu0 0
    %268 = vmatmul.mubr.bf16.gmra.mrb[0].mxu0 %v122
    %v269 = vpop.f32.mrb[0].mxu0
    %v270 = vadd.f32 %v81, %v269
    %v271 = vpop.f32.mrb[0].mxu0
    %v272 = vpop.f32.mrb[0].mxu0
    %v273 = vadd.f32 %v81, %v272
    %v274 = vpop.f32.mrb[0].mxu0
    %275 = vdwg.mxu0
    %v276 = vpack.c.bf16 %v217, %v214
    %v277 = vpack.c.bf16 %v225, %v222
    %v278 = vpack.c.bf16 %v233, %v230
    %v279 = vpack.c.bf16 %v241, %v238
    %v280 = vpack.c.bf16 %v249, %v246
    %v281 = vpack.c.bf16 %v257, %v254
    %v282 = vpack.c.bf16 %v265, %v262
    %v283 = vpack.c.bf16 %v273, %v270
    %v292 = vunpack.c.l.b16 %v276
    %v293 = vunpack.c.h.b16 %v276
    %v294 = vunpack.c.l.b16 %v277
    %v295 = vunpack.c.h.b16 %v277
    %v296 = vunpack.c.l.b16 %v278
    %v297 = vunpack.c.h.b16 %v278
    %v298 = vunpack.c.l.b16 %v279
    %v299 = vunpack.c.h.b16 %v279
    %v300 = vunpack.c.l.b16 %v280
    %v301 = vunpack.c.h.b16 %v280
    %v302 = vunpack.c.l.b16 %v281
    %v303 = vunpack.c.h.b16 %v281
    %v304 = vunpack.c.l.b16 %v282
    %v305 = vunpack.c.h.b16 %v282
    %v306 = vunpack.c.l.b16 %v283
    %v307 = vunpack.c.h.b16 %v283
    %v308 = vpack.c.b16 %v292, %v292
    %v309 = vpack.c.b16 %v293, %v293
    %v310 = vpack.c.b16 %v294, %v294
    %v311 = vpack.c.b16 %v295, %v295
    %v312 = vpack.c.b16 %v296, %v296
    %v313 = vpack.c.b16 %v297, %v297
    %v314 = vpack.c.b16 %v298, %v298
    %v315 = vpack.c.b16 %v299, %v299
    %v316 = vpack.c.b16 %v300, %v300
    %v317 = vpack.c.b16 %v301, %v301
    %v318 = vpack.c.b16 %v302, %v302
    %v319 = vpack.c.b16 %v303, %v303
    %v320 = vpack.c.b16 %v304, %v304
    %v321 = vpack.c.b16 %v305, %v305
    %v322 = vpack.c.b16 %v306, %v306
    %v323 = vpack.c.b16 %v307, %v307
    %340 = vst [vmem:[#allocation7] sm:$0xf] %v308
    %341 = vst [vmem:[#allocation7 + $0x4] sm:$0xf] %v309
    %342 = vst [vmem:[#allocation7 + $0x8] sm:$0xf] %v310
    %343 = vst [vmem:[#allocation7 + $0xc] sm:$0xf] %v311
    %344 = vst [vmem:[#allocation7 + $0x10] sm:$0xf] %v312
    %345 = vst [vmem:[#allocation7 + $0x14] sm:$0xf] %v313
    %346 = vst [vmem:[#allocation7 + $0x18] sm:$0xf] %v314
    %347 = vst [vmem:[#allocation7 + $0x1c] sm:$0xf] %v315
    %348 = vst [vmem:[#allocation7 + $0x20] sm:$0xf] %v316
    %349 = vst [vmem:[#allocation7 + $0x24] sm:$0xf] %v317
    %350 = vst [vmem:[#allocation7 + $0x28] sm:$0xf] %v318
    %351 = vst [vmem:[#allocation7 + $0x2c] sm:$0xf] %v319
    %352 = vst [vmem:[#allocation7 + $0x30] sm:$0xf] %v320
    %353 = vst [vmem:[#allocation7 + $0x34] sm:$0xf] %v321
    %354 = vst [vmem:[#allocation7 + $0x38] sm:$0xf] %v322
    %355 = vst [vmem:[#allocation7 + $0x3c] sm:$0xf] %v323
    // Predicated region
    $region22: #{tpu_custom_call.1} parent=1 // pred_check
      _
    $region23: #{tpu_custom_call.1} parent=1 // pred_check_branch
      %357 = sbr.rel (0) target = $region25
    $region24: #{tpu_custom_call.1} parent=1 // pred_region
      %s359 = ssub.s32 1024, 1024
      %360 = vsyncadd [#allocation4], %s359
      %s361 = sshll.u32 [#allocation7], 4
      %s362 = int_to_ptr.vmem [resolvable:$true] %s361
      %367 = dma.vmem_to_hbm [thread:$0]  %s362, 1024, %s3, [#allocation4], 64, 64, 4
    $region25: #{tpu_custom_call.1} parent=1 // pred_fallthru
      _
    // Predicated region
    $region26: #{tpu_custom_call.1} parent=1 // pred_check
      _
    $region27: #{tpu_custom_call.1} parent=1 // pred_check_branch
      %369 = sbr.rel (0) target = $region29
    $region28: #{tpu_custom_call.1} parent=1 // pred_region
      %370 = dma.done [#allocation4], 1024
    $region29: #{tpu_custom_call.1} parent=1 // pred_fallthru
      _
    %371 = vsyncpa [#allocation3], 1
    %372 = vsyncpa [#allocation6], 1
    %373 = vsyncpa [#allocation4], 1

</llo_original>
